<compile_context>
chip_gen: v7x
topology: tpu7x:2x2x1
jax: 0.10.0
libtpu: 0.0.40
codegen_flags: <defaults>
</compile_context>

<pallas_src>
from functools import partial

import jax
import jax.numpy as jnp
from jax import lax
from jax.experimental import pallas as pl
from jax.experimental.pallas import tpu as pltpu

EPS = 1e-5


# ---------------------------------------------------------------------------
# Pallas kernels
# ---------------------------------------------------------------------------
def _conv_bnstats_kernel(x_ref, w_ref, y_ref, stats_ref):
    # x_ref:     (RPB, TOH+1, Wo+1, 4*Cin)  space-to-depth input bands (+1 halo)
    # w_ref:     (4, 4*Cin, Cout)           per-shift packed conv weights
    # y_ref:     (RPB, Cout, TOH*Wo)        conv output, channel-major (lane-dense)
    # stats_ref: (1, 2, Cout)               per-block [sum, sum_of_squares] in f32
    rpb, toh1, wo1, c4 = x_ref.shape
    toh, wo = toh1 - 1, wo1 - 1
    s = toh * wo

    xb = x_ref[...]
    acc = None
    # 3x3 stride-2 conv == 4 accumulating matmuls over the space-to-depth input,
    # one per (row-shift, col-shift) in {0,1}^2; unused phase rows of the weight
    # matrices are zero, so the +1 halo row/col never contributes spurious taps.
    for idx, (dh, dw) in enumerate(((0, 0), (0, 1), (1, 0), (1, 1))):
        xs = xb[:, dh:dh + toh, dw:dw + wo, :].reshape(rpb * s, c4)
        part = jnp.dot(xs, w_ref[idx], preferred_element_type=jnp.float32)
        acc = part if acc is None else acc + part

    # Channel-major store: spatial on lanes (lane-dense), matches final NCHW.
    for g in range(rpb):
        y_ref[g] = acc[g * s:(g + 1) * s, :].T.astype(y_ref.dtype)

    # Fused BatchNorm partial statistics (f32 accumulator).
    stats_ref[0] = jnp.concatenate(
        [jnp.sum(acc, axis=0, keepdims=True),
         jnp.sum(acc * acc, axis=0, keepdims=True)], axis=0)


def _bn_relu_kernel(y_ref, scale_ref, shift_ref, o_ref):
    # y_ref: (1, 1, Cout, S)  scale/shift: (Cout, 1)  o_ref: (1, Cout, S)
    y = y_ref[0, 0].astype(jnp.float32)
    o_ref[0] = jnp.maximum(y * scale_ref[...] + shift_ref[...],
                           0.0).astype(o_ref.dtype)


# ---------------------------------------------------------------------------
# Layout helpers (cheap XLA-side plumbing, ~1x input traffic)
# ---------------------------------------------------------------------------
def _space_to_depth_pad(x_nchw):
    """NCHW -> padded, space-to-depth-2 NHWC': (N, Ho+1, Wo+1, 4*Cin)."""
    n, cin, h, w = x_nchw.shape
    ho = (h + 2 - 3) // 2 + 1
    wo = (w + 2 - 3) // 2 + 1
    hp2, wp2 = 2 * (ho + 1), 2 * (wo + 1)
    x = jnp.transpose(x_nchw, (0, 2, 3, 1))                          # NHWC
    xp = jnp.pad(x, ((0, 0), (1, hp2 - h - 1), (1, wp2 - w - 1), (0, 0)))
    s2d = xp.reshape(n, ho + 1, 2, wo + 1, 2, cin)
    s2d = jnp.transpose(s2d, (0, 1, 3, 2, 4, 5)).reshape(n, ho + 1, wo + 1, 4 * cin)
    return s2d, ho, wo


def _pack_weights(w_oihw):
    """(Cout, Cin, 3, 3) -> (4, 4*Cin, Cout) per-shift matrices (zero-padded)."""
    cout, cin = w_oihw.shape[0], w_oihw.shape[1]
    w4 = jnp.zeros((2, 2, 2, 2, cin, cout), w_oihw.dtype)  # (dh, dw, ph, pw, ci, co)
    for kh in range(3):
        for kw in range(3):
            dh, ph = divmod(kh, 2)
            dw, pw = divmod(kw, 2)
            w4 = w4.at[dh, dw, ph, pw].set(w_oihw[:, :, kh, kw].T)
    return w4.reshape(4, 4 * cin, cout)


def _choose_tiles(n, ho, wo, target_rows=512):
    """Pick (rows-per-row-tile, #row-tiles, bands-per-block) -> M ~ 256-512."""
    if ho * wo <= 2 * target_rows:
        toh = ho
    else:
        toh = min(ho, max(1, target_rows // wo))
        # keep every BlockSpec last-dim either full or a multiple of 128
        while toh > 1 and (toh * wo) % 128 != 0:
            toh -= 1
        if (toh * wo) % 128 != 0:
            toh = ho
    n_tiles = -(-ho // toh)
    q = n * n_tiles
    rpb = max(1, min(q, target_rows // (toh * wo)))
    while q % rpb:
        rpb -= 1
    return toh, n_tiles, rpb


# ---------------------------------------------------------------------------
# Public wrapper
# ---------------------------------------------------------------------------
@partial(jax.jit, static_argnames=("compute_dtype",))
def strided_conv_block(x_nchw, w_oihw, bias, gamma, beta, *,
                       compute_dtype=jnp.bfloat16):
    # Conv bias is an exact no-op under training-mode BN (absorbed by the mean).
    del bias

    n, cin, h, w = x_nchw.shape
    cout = w_oihw.shape[0]
    s2d, ho, wo = _space_to_depth_pad(x_nchw)
    c4 = 4 * cin

    toh, n_tiles, rpb = _choose_tiles(n, ho, wo)
    ho_pad = toh * n_tiles
    s = toh * wo
    q = n * n_tiles
    nb = q // rpb

    # Row bands with a 1-row halo (overlap handled in XLA, negligible blowup).
    s2d = jnp.pad(s2d, ((0, 0), (0, ho_pad - ho), (0, 0), (0, 0)))
    bands = jnp.stack([s2d[:, t * toh: t * toh + toh + 1] for t in range(n_tiles)],
                      axis=1)
    bands = bands.reshape(q, toh + 1, wo + 1, c4).astype(compute_dtype)
    w4 = _pack_weights(w_oihw).astype(compute_dtype)

    itemsize = jnp.dtype(compute_dtype).itemsize

    # --- Kernel 1: conv (4 shifted matmuls) + fused BN partial stats ---
    y, stats = pl.pallas_call(
        _conv_bnstats_kernel,
        out_shape=(jax.ShapeDtypeStruct((q, cout, s), compute_dtype),
                   jax.ShapeDtypeStruct((nb, 2, cout), jnp.float32)),
        grid_spec=pltpu.PrefetchScalarGridSpec(
            num_scalar_prefetch=0,
            grid=(nb,),
            in_specs=[
                pl.BlockSpec((rpb, toh + 1, wo + 1, c4), lambda b: (b, 0, 0, 0)),
                pl.BlockSpec((4, c4, cout), lambda b: (0, 0, 0)),
            ],
            out_specs=[
                pl.BlockSpec((rpb, cout, s), lambda b: (b, 0, 0)),
                pl.BlockSpec((1, 2, cout), lambda b: (b, 0, 0)),
            ],
        ),
        compiler_params=pltpu.CompilerParams(
            dimension_semantics=("parallel",),
            vmem_limit_bytes=32 * 1024 * 1024),
        cost_estimate=pl.CostEstimate(
            flops=2 * q * s * 4 * c4 * cout,
            transcendentals=0,
            bytes_accessed=(q * (toh + 1) * (wo + 1) * c4 * itemsize
                            + 4 * c4 * cout * itemsize
                            + q * cout * s * itemsize
                            + nb * 2 * cout * 4)),
    )(bands, w4)

    # --- Finalize BN stats (tiny reduction in XLA); padded rows contribute 0 ---
    m_true = n * ho * wo
    tot = jnp.sum(stats, axis=0)                       # (2, Cout), f32
    mean = tot[0] / m_true
    var = jnp.maximum(tot[1] / m_true - mean * mean, 0.0)   # biased (training BN)
    inv = lax.rsqrt(var + EPS)
    scale = (gamma * inv).astype(jnp.float32).reshape(cout, 1)
    shift = (beta - mean * gamma * inv).astype(jnp.float32).reshape(cout, 1)

    # --- Kernel 2: tiled per-channel scale/shift + ReLU, writes NCHW directly ---
    y4 = y.reshape(n, n_tiles, cout, s)
    out = pl.pallas_call(
        _bn_relu_kernel,
        out_shape=jax.ShapeDtypeStruct((n, cout, n_tiles * s), x_nchw.dtype),
        grid_spec=pltpu.PrefetchScalarGridSpec(
            num_scalar_prefetch=0,
            grid=(n, n_tiles),
            in_specs=[
                pl.BlockSpec((1, 1, cout, s), lambda ni, ti: (ni, ti, 0, 0)),
                pl.BlockSpec((cout, 1), lambda ni, ti: (0, 0)),
                pl.BlockSpec((cout, 1), lambda ni, ti: (0, 0)),
            ],
            out_specs=pl.BlockSpec((1, cout, s), lambda ni, ti: (ni, 0, ti)),
        ),
        compiler_params=pltpu.CompilerParams(
            dimension_semantics=("parallel", "parallel"),
            vmem_limit_bytes=32 * 1024 * 1024),
        cost_estimate=pl.CostEstimate(
            flops=2 * q * cout * s,
            transcendentals=0,
            bytes_accessed=(q * cout * s * itemsize
                            + n * cout * n_tiles * s * 4
                            + 2 * cout * 4)),
    )(y4, scale, shift)

    out = out.reshape(n, cout, ho_pad, wo)
    if ho_pad != ho:
        out = out[:, :, :ho, :]
    return out


# ---------------------------------------------------------------------------
# Pure-JAX reference (for correctness check)
# ---------------------------------------------------------------------------
def reference(x, w, b, gamma, beta):
    y = lax.conv_general_dilated(
        x, w, window_strides=(2, 2), padding=((1, 1), (1, 1)),
        dimension_numbers=("NCHW", "OIHW", "NCHW"))
    y = y + b[None, :, None, None]
    mean = y.mean(axis=(0, 2, 3), keepdims=True)
    var = y.var(axis=(0, 2, 3), keepdims=True)  # biased, PyTorch training BN
    yhat = (y - mean) * lax.rsqrt(var + EPS)
    return jnp.maximum(yhat * gamma[None, :, None, None]
                       + beta[None, :, None, None], 0.0)


if __name__ == "__main__":
    N, Cin, Cout, H, W = 2, 4, 8, 16, 16

    key = jax.random.PRNGKey(0)
    kx, kw, kb = jax.random.split(key, 3)

    x = jax.random.normal(kx, (N, Cin, H, W), dtype=jnp.float32)

    # Deterministic init (shapes from nn.Conv2d(4, 8, 3) / nn.BatchNorm2d(8))
    fan_in = Cin * 3 * 3
    bound = 1.0 / jnp.sqrt(float(fan_in))
    w_oihw = jax.random.uniform(kw, (Cout, Cin, 3, 3), minval=-bound, maxval=bound,
                                dtype=jnp.float32)
    bias = jax.random.uniform(kb, (Cout,), minval=-bound, maxval=bound,
                              dtype=jnp.float32)
    gamma = jnp.ones((Cout,), dtype=jnp.float32)
    beta = jnp.zeros((Cout,), dtype=jnp.float32)

    ref = reference(x, w_oihw, bias, gamma, beta)

    # f32 MXU path: tight tolerance check against the reference.
    out32 = strided_conv_block(x, w_oihw, bias, gamma, beta,
                               compute_dtype=jnp.float32)
    out32 = jax.block_until_ready(out32)
    assert out32.shape == (N, Cout, H // 2, W // 2), out32.shape
    assert jnp.allclose(out32, ref, rtol=1e-4, atol=1e-4), \
        f"f32 max abs err = {jnp.max(jnp.abs(out32 - ref))}"

    # bf16 MXU path (v6e/v7x-friendly), f32 accumulation: loose sanity check.
    out16 = strided_conv_block(x, w_oihw, bias, gamma, beta,
                               compute_dtype=jnp.bfloat16)
    out16 = jax.block_until_ready(out16)
    assert out16.shape == (N, Cout, H // 2, W // 2), out16.shape
    assert jnp.allclose(out16, ref, rtol=1e-1, atol=1e-1), \
        f"bf16 max abs err = {jnp.max(jnp.abs(out16 - ref))}"

    print("KERNEL_OK")
</pallas_src>

<mosaic_0001>
module attributes {stable_mosaic.version = 11 : i64} {
  func.func @_bn_relu_kernel(%arg0: i32, %arg1: i32, %arg2: memref<1x1x8x64xf32, #tpu.memory_space<vmem>>, %arg3: memref<8x1xf32, #tpu.memory_space<vmem>>, %arg4: memref<8x1xf32, #tpu.memory_space<vmem>>, %arg5: memref<1x8x64xf32, #tpu.memory_space<vmem>>) attributes {dimension_semantics = [#tpu.dimension_semantics<parallel>, #tpu.dimension_semantics<parallel>], iteration_bounds = array<i64: 2, 1>, scalar_prefetch = 0 : i64, scratch_operands = 0 : i64, tpu.core_type = #tpu.core_type<tc>, window_params = [{transform_indices = @transform_0, window_bounds = array<i64: 1, 1, 8, 64>}, {pipeline_mode = #tpu.pipeline_mode<synchronous>, transform_indices = @transform_1, window_bounds = array<i64: 8, 1>}, {pipeline_mode = #tpu.pipeline_mode<synchronous>, transform_indices = @transform_2, window_bounds = array<i64: 8, 1>}, {transform_indices = @transform_3, window_bounds = array<i64: 1, 8, 64>}]} {
    %c0 = arith.constant 0 : index
    %c0_0 = arith.constant 0 : index
    %c0_1 = arith.constant 0 : index
    %c0_2 = arith.constant 0 : index
    %0 = vector.load %arg2[%c0, %c0_0, %c0_1, %c0_2] : memref<1x1x8x64xf32, #tpu.memory_space<vmem>>, vector<1x1x8x64xf32>
    %1 = vector.shape_cast %0 : vector<1x1x8x64xf32> to vector<8x64xf32>
    %c0_3 = arith.constant 0 : index
    %c0_4 = arith.constant 0 : index
    %2 = vector.load %arg3[%c0_3, %c0_4] : memref<8x1xf32, #tpu.memory_space<vmem>>, vector<8x1xf32>
    %3 = vector.broadcast %2 : vector<8x1xf32> to vector<8x64xf32>
    %4 = arith.mulf %1, %3 : vector<8x64xf32>
    %c0_5 = arith.constant 0 : index
    %c0_6 = arith.constant 0 : index
    %5 = vector.load %arg4[%c0_5, %c0_6] : memref<8x1xf32, #tpu.memory_space<vmem>>, vector<8x1xf32>
    %6 = vector.broadcast %5 : vector<8x1xf32> to vector<8x64xf32>
    %7 = arith.addf %4, %6 : vector<8x64xf32>
    %cst = arith.constant 0.000000e+00 : f32
    %8 = vector.broadcast %cst : f32 to vector<8x64xf32>
    %9 = arith.maximumf %7, %8 : vector<8x64xf32>
    %c0_7 = arith.constant 0 : index
    %c0_8 = arith.constant 0 : index
    %c0_9 = arith.constant 0 : index
    %10 = vector.load %arg5[%c0_7, %c0_8, %c0_9] : memref<1x8x64xf32, #tpu.memory_space<vmem>>, vector<1x8x64xf32>
    %11 = vector.shape_cast %10 : vector<1x8x64xf32> to vector<8x64xf32>
    %12 = vector.shape_cast %9 : vector<8x64xf32> to vector<1x8x64xf32>
    tpu.vector_store %arg5[%c0_7, %c0_8, %c0_9], %12 {strides = array<i32>} : memref<1x8x64xf32, #tpu.memory_space<vmem>>, vector<1x8x64xf32>,
    return
  }
  func.func @transform_0(%arg0: i32, %arg1: i32) -> (i32, i32, i32, i32) {
    %c0_i32 = arith.constant 0 : i32
    %c0_i32_0 = arith.constant 0 : i32
    %c0_i32_1 = arith.constant 0 : i32
    return %arg0, %arg1, %c0_i32, %c0_i32_0 : i32, i32, i32, i32
  }
  func.func @transform_1(%arg0: i32, %arg1: i32) -> (i32, i32) {
    %c0_i32 = arith.constant 0 : i32
    %c0_i32_0 = arith.constant 0 : i32
    %c0_i32_1 = arith.constant 0 : i32
    return %c0_i32, %c0_i32_0 : i32, i32
  }
  func.func @transform_2(%arg0: i32, %arg1: i32) -> (i32, i32) {
    %c0_i32 = arith.constant 0 : i32
    %c0_i32_0 = arith.constant 0 : i32
    %c0_i32_1 = arith.constant 0 : i32
    return %c0_i32, %c0_i32_0 : i32, i32
  }
  func.func @transform_3(%arg0: i32, %arg1: i32) -> (i32, i32, i32) {
    %c0_i32 = arith.constant 0 : i32
    %c0_i32_0 = arith.constant 0 : i32
    return %arg0, %c0_i32, %arg1 : i32, i32, i32
  }
}

module attributes {stable_mosaic.version = 11 : i64} {
  func.func @_conv_bnstats_kernel(%arg0: i32, %arg1: memref<2x9x9x16xf32, #tpu.memory_space<vmem>>, %arg2: memref<4x16x8xf32, #tpu.memory_space<vmem>>, %arg3: memref<2x8x64xf32, #tpu.memory_space<vmem>>, %arg4: memref<1x2x8xf32, #tpu.memory_space<vmem>>) attributes {dimension_semantics = [#tpu.dimension_semantics<parallel>], iteration_bounds = array<i64: 1>, scalar_prefetch = 0 : i64, scratch_operands = 0 : i64, tpu.core_type = #tpu.core_type<tc>, window_params = [{transform_indices = @transform_0, window_bounds = array<i64: 2, 9, 9, 16>}, {pipeline_mode = #tpu.pipeline_mode<synchronous>, transform_indices = @transform_1, window_bounds = array<i64: 4, 16, 8>}, {transform_indices = @transform_2, window_bounds = array<i64: 2, 8, 64>}, {transform_indices = @transform_3, window_bounds = array<i64: 1, 2, 8>}]} {
    %c0 = arith.constant 0 : index
    %c0_0 = arith.constant 0 : index
    %c0_1 = arith.constant 0 : index
    %c0_2 = arith.constant 0 : index
    %0 = vector.load %arg1[%c0, %c0_0, %c0_1, %c0_2] : memref<2x9x9x16xf32, #tpu.memory_space<vmem>>, vector<2x9x9x16xf32>
    %1 = vector.extract_strided_slice %0 {offsets = [0, 0, 0, 0], sizes = [2, 8, 8, 16], strides = [1, 1, 1, 1]} : vector<2x9x9x16xf32> to vector<2x8x8x16xf32>
    %2 = vector.shape_cast %1 : vector<2x8x8x16xf32> to vector<128x16xf32>
    %c0_3 = arith.constant 0 : index
    %c0_4 = arith.constant 0 : index
    %c0_5 = arith.constant 0 : index
    %3 = vector.load %arg2[%c0_3, %c0_4, %c0_5] : memref<4x16x8xf32, #tpu.memory_space<vmem>>, vector<1x16x8xf32>
    %4 = vector.shape_cast %3 : vector<1x16x8xf32> to vector<16x8xf32>
    %cst = arith.constant dense<0.000000e+00> : vector<128x8xf32>
    %5 = tpu.matmul %2, %4, %cst {dimension_numbers = #tpu.dot_dimension_numbers<[1], [0], [0], [1], [0, 0, 1, 1], [], []>} : vector<128x16xf32>, vector<16x8xf32>, vector<128x8xf32> -> vector<128x8xf32>
    %6 = vector.extract_strided_slice %0 {offsets = [0, 0, 1, 0], sizes = [2, 8, 8, 16], strides = [1, 1, 1, 1]} : vector<2x9x9x16xf32> to vector<2x8x8x16xf32>
    %7 = vector.shape_cast %6 : vector<2x8x8x16xf32> to vector<128x16xf32>
    %c1 = arith.constant 1 : index
    %c0_6 = arith.constant 0 : index
    %c0_7 = arith.constant 0 : index
    %8 = vector.load %arg2[%c1, %c0_6, %c0_7] : memref<4x16x8xf32, #tpu.memory_space<vmem>>, vector<1x16x8xf32>
    %9 = vector.shape_cast %8 : vector<1x16x8xf32> to vector<16x8xf32>
    %cst_8 = arith.constant dense<0.000000e+00> : vector<128x8xf32>
    %10 = tpu.matmul %7, %9, %cst_8 {dimension_numbers = #tpu.dot_dimension_numbers<[1], [0], [0], [1], [0, 0, 1, 1], [], []>} : vector<128x16xf32>, vector<16x8xf32>, vector<128x8xf32> -> vector<128x8xf32>
    %11 = arith.addf %5, %10 : vector<128x8xf32>
    %12 = vector.extract_strided_slice %0 {offsets = [0, 1, 0, 0], sizes = [2, 8, 8, 16], strides = [1, 1, 1, 1]} : vector<2x9x9x16xf32> to vector<2x8x8x16xf32>
    %13 = vector.shape_cast %12 : vector<2x8x8x16xf32> to vector<128x16xf32>
    %c2 = arith.constant 2 : index
    %c0_9 = arith.constant 0 : index
    %c0_10 = arith.constant 0 : index
    %14 = vector.load %arg2[%c2, %c0_9, %c0_10] : memref<4x16x8xf32, #tpu.memory_space<vmem>>, vector<1x16x8xf32>
    %15 = vector.shape_cast %14 : vector<1x16x8xf32> to vector<16x8xf32>
    %cst_11 = arith.constant dense<0.000000e+00> : vector<128x8xf32>
    %16 = tpu.matmul %13, %15, %cst_11 {dimension_numbers = #tpu.dot_dimension_numbers<[1], [0], [0], [1], [0, 0, 1, 1], [], []>} : vector<128x16xf32>, vector<16x8xf32>, vector<128x8xf32> -> vector<128x8xf32>
    %17 = arith.addf %11, %16 : vector<128x8xf32>
    %18 = vector.extract_strided_slice %0 {offsets = [0, 1, 1, 0], sizes = [2, 8, 8, 16], strides = [1, 1, 1, 1]} : vector<2x9x9x16xf32> to vector<2x8x8x16xf32>
    %19 = vector.shape_cast %18 : vector<2x8x8x16xf32> to vector<128x16xf32>
    %c3 = arith.constant 3 : index
    %c0_12 = arith.constant 0 : index
    %c0_13 = arith.constant 0 : index
    %20 = vector.load %arg2[%c3, %c0_12, %c0_13] : memref<4x16x8xf32, #tpu.memory_space<vmem>>, vector<1x16x8xf32>
    %21 = vector.shape_cast %20 : vector<1x16x8xf32> to vector<16x8xf32>
    %cst_14 = arith.constant dense<0.000000e+00> : vector<128x8xf32>
    %22 = tpu.matmul %19, %21, %cst_14 {dimension_numbers = #tpu.dot_dimension_numbers<[1], [0], [0], [1], [0, 0, 1, 1], [], []>} : vector<128x16xf32>, vector<16x8xf32>, vector<128x8xf32> -> vector<128x8xf32>
    %23 = arith.addf %17, %22 : vector<128x8xf32>
    %24 = vector.extract_strided_slice %23 {offsets = [0, 0], sizes = [64, 8], strides = [1, 1]} : vector<128x8xf32> to vector<64x8xf32>
    %25 = tpu.transpose %24, [1, 0] : vector<64x8xf32> -> vector<8x64xf32>
    %c0_15 = arith.constant 0 : index
    %c0_16 = arith.constant 0 : index
    %c0_17 = arith.constant 0 : index
    %26 = vector.load %arg3[%c0_15, %c0_16, %c0_17] : memref<2x8x64xf32, #tpu.memory_space<vmem>>, vector<1x8x64xf32>
    %27 = vector.shape_cast %26 : vector<1x8x64xf32> to vector<8x64xf32>
    %28 = vector.shape_cast %25 : vector<8x64xf32> to vector<1x8x64xf32>
    tpu.vector_store %arg3[%c0_15, %c0_16, %c0_17], %28 {strides = array<i32>} : memref<2x8x64xf32, #tpu.memory_space<vmem>>, vector<1x8x64xf32>,
    %29 = vector.extract_strided_slice %23 {offsets = [64, 0], sizes = [64, 8], strides = [1, 1]} : vector<128x8xf32> to vector<64x8xf32>
    %30 = tpu.transpose %29, [1, 0] : vector<64x8xf32> -> vector<8x64xf32>
    %c1_18 = arith.constant 1 : index
    %c0_19 = arith.constant 0 : index
    %c0_20 = arith.constant 0 : index
    %31 = vector.load %arg3[%c1_18, %c0_19, %c0_20] : memref<2x8x64xf32, #tpu.memory_space<vmem>>, vector<1x8x64xf32>
    %32 = vector.shape_cast %31 : vector<1x8x64xf32> to vector<8x64xf32>
    %33 = vector.shape_cast %30 : vector<8x64xf32> to vector<1x8x64xf32>
    tpu.vector_store %arg3[%c1_18, %c0_19, %c0_20], %33 {strides = array<i32>} : memref<2x8x64xf32, #tpu.memory_space<vmem>>, vector<1x8x64xf32>,
    %cst_21 = arith.constant dense<0.000000e+00> : vector<8xf32>
    %34 = vector.multi_reduction <add>, %23, %cst_21 [0] : vector<128x8xf32> to vector<8xf32>
    %35 = vector.shape_cast %34 : vector<8xf32> to vector<1x8xf32>
    %36 = arith.mulf %23, %23 : vector<128x8xf32>
    %cst_22 = arith.constant dense<0.000000e+00> : vector<8xf32>
    %37 = vector.multi_reduction <add>, %36, %cst_22 [0] : vector<128x8xf32> to vector<8xf32>
    %38 = vector.shape_cast %37 : vector<8xf32> to vector<1x8xf32>
    %39 = tpu.concatenate %35, %38 in 0 : vector<1x8xf32>, vector<1x8xf32> -> vector<2x8xf32>
    %c0_23 = arith.constant 0 : index
    %c0_24 = arith.constant 0 : index
    %c0_25 = arith.constant 0 : index
    %40 = vector.load %arg4[%c0_23, %c0_24, %c0_25] : memref<1x2x8xf32, #tpu.memory_space<vmem>>, vector<1x2x8xf32>
    %41 = vector.shape_cast %40 : vector<1x2x8xf32> to vector<2x8xf32>
    %42 = vector.shape_cast %39 : vector<2x8xf32> to vector<1x2x8xf32>
    tpu.vector_store %arg4[%c0_23, %c0_24, %c0_25], %42 {strides = array<i32>} : memref<1x2x8xf32, #tpu.memory_space<vmem>>, vector<1x2x8xf32>,
    return
  }
  func.func @transform_0(%arg0: i32) -> (i32, i32, i32, i32) {
    %c0_i32 = arith.constant 0 : i32
    %c0_i32_0 = arith.constant 0 : i32
    %c0_i32_1 = arith.constant 0 : i32
    %c0_i32_2 = arith.constant 0 : i32
    return %arg0, %c0_i32, %c0_i32_0, %c0_i32_1 : i32, i32, i32, i32
  }
  func.func @transform_1(%arg0: i32) -> (i32, i32, i32) {
    %c0_i32 = arith.constant 0 : i32
    %c0_i32_0 = arith.constant 0 : i32
    %c0_i32_1 = arith.constant 0 : i32
    %c0_i32_2 = arith.constant 0 : i32
    return %c0_i32, %c0_i32_0, %c0_i32_1 : i32, i32, i32
  }
  func.func @transform_2(%arg0: i32) -> (i32, i32, i32) {
    %c0_i32 = arith.constant 0 : i32
    %c0_i32_0 = arith.constant 0 : i32
    %c0_i32_1 = arith.constant 0 : i32
    return %arg0, %c0_i32, %c0_i32_0 : i32, i32, i32
  }
  func.func @transform_3(%arg0: i32) -> (i32, i32, i32) {
    %c0_i32 = arith.constant 0 : i32
    %c0_i32_0 = arith.constant 0 : i32
    %c0_i32_1 = arith.constant 0 : i32
    return %arg0, %c0_i32, %c0_i32_0 : i32, i32, i32
  }
}

</mosaic_0001>

<llo_original>
// kernel: strided_conv_block.3
$region0: #{strided_conv_block.3}
  #allocation0 [shape = 'u32[]', space=smem, size = 0x4, offset = 0x4, fixed_abs, tag = 'smem constant byte address 0x4 - core index']
  #allocation1 [shape = 'u32[144,128]{1,0:T(1,128)}', space=vmem, size = 0x12000, scoped, tag = 'internal scratch']
  %s0 = inlined_call_operand.vmem [shape: f32[2,1,8,64], index: 0, kind: input, shape index: {}]
  %s1 = inlined_call_operand.vmem [shape: f32[8,1], index: 1, kind: input, shape index: {}]
  %s2 = inlined_call_operand.vmem [shape: f32[8,1], index: 2, kind: input, shape index: {}]
  %s3 = inlined_call_operand.vmem [shape: f32[2,8,64], index: 3, kind: output, shape index: {}]
  %s4 = sld [smem:[#allocation0]]
  $region45: #{strided_conv_block.3} parent=0
    _
  %s6 = ssub.s32 1, %s4
  %s7 = scalar_select 0, %s6, %s4
  loop: start=0, step=1, limit=4
  $region2: #{strided_conv_block.3} parent=0 // loop_pre_header
    _
  $region3: #{strided_conv_block.3} parent=0 // loop_header
    %s9 = sphi 0, %s13
    %p10 = scmp.ge.s32.totalorder %s9, 4
    %s16 = sphi 0, %s28
    %s17 = sphi 0, %s24
    %s18 = sphi 0, %s16
    %s19 = sphi 0, %s17
    %s20 = sphi 0, %s18
    %s21 = sphi 0, %s19
    %s33 = sphi 0, %s35
    %s36 = sphi 0, %s33
    %s37 = sphi 0, %s36
    %s53 = sphi 0, %s37
    %s57 = sphi 0, %s57
    %s59 = sphi 0, %s57
    %s60 = sphi 0, %s59
    %s74 = sphi 0, %s60
    %s78 = sphi 0, %s78
    %s80 = sphi 0, %s78
    %s81 = sphi 0, %s80
    %s95 = sphi 0, %s81
    %s103 = sphi 0, %s105
    %s106 = sphi 0, %s103
    %s107 = sphi 0, %s106
    %s123 = sphi 0, %s107
  $region4: #{strided_conv_block.3} parent=0 // loop_header_branch
    %12 = sbr.rel (%p10) target = $region8
  $region5: #{strided_conv_block.3} parent=0 // loop_body
    %s14 = ssub.s32 %s9, 1
    %s15 = ssub.s32 %s9, 2
    %s22 = sadd.s32 1, %s17
    %p23 = scmp.ge.s32.totalorder %s22, 1
    %s24 = scalar_select %p23, 0, %s22
    %s25 = sadd.s32 1, %s16
    %s26 = scalar_select %p23, %s25, %s16
    %p27 = scmp.ge.s32.totalorder %s26, 2
    %s28 = scalar_select %p27, 0, %s26
    %s29 = ssub.s32 %s16, %s28
    %s30 = ssub.s32 %s17, %s24
    %s31 = sor.u32 %s29, %s30
    %p32 = scmp.eq.s32.totalorder %s31, 0
    %s34 = sadd.s32 %s33, 1
    %s35 = scalar_select %p32, %s33, %s34
    %p38 = pneg %p32
    %p39 = scmp.eq.s32.totalorder %s9, 1
    %p40 = por %p38, %p39
    %p41 = scmp.ne.s32.totalorder %s33, %s36
    %p42 = scmp.eq.s32.totalorder %s9, 0
    %p43 = por %p41, %p42
    %p44 = scmp.ne.s32.totalorder %s33, %s36
    %p45 = scmp.eq.s32.totalorder %s14, 1
    %p46 = por %p44, %p45
    %p47 = scmp.ne.s32.totalorder %s36, %s37
    %p48 = scmp.eq.s32.totalorder %s14, 0
    %p49 = por %p47, %p48
    %p50 = scmp.ne.s32.totalorder %s36, %s37
    %p51 = scmp.eq.s32.totalorder %s15, 1
    %p52 = por %p50, %p51
    %p54 = scmp.ne.s32.totalorder %s37, %s53
    %p55 = scmp.eq.s32.totalorder %s15, 0
    %p56 = por %p54, %p55
    %s58 = sadd.s32 %s57, 1
    %p61 = scmp.eq.s32.totalorder %s9, 1
    %p62 = scmp.ne.s32.totalorder %s57, %s59
    %p63 = scmp.eq.s32.totalorder %s9, 0
    %p64 = por %p62, %p63
    %p65 = scmp.ne.s32.totalorder %s57, %s59
    %p66 = scmp.eq.s32.totalorder %s14, 1
    %p67 = por %p65, %p66
    %p68 = scmp.ne.s32.totalorder %s59, %s60
    %p69 = scmp.eq.s32.totalorder %s14, 0
    %p70 = por %p68, %p69
    %p71 = scmp.ne.s32.totalorder %s59, %s60
    %p72 = scmp.eq.s32.totalorder %s15, 1
    %p73 = por %p71, %p72
    %p75 = scmp.ne.s32.totalorder %s60, %s74
    %p76 = scmp.eq.s32.totalorder %s15, 0
    %p77 = por %p75, %p76
    %s79 = sadd.s32 %s78, 1
    %p82 = scmp.eq.s32.totalorder %s9, 1
    %p83 = scmp.ne.s32.totalorder %s78, %s80
    %p84 = scmp.eq.s32.totalorder %s9, 0
    %p85 = por %p83, %p84
    %p86 = scmp.ne.s32.totalorder %s78, %s80
    %p87 = scmp.eq.s32.totalorder %s14, 1
    %p88 = por %p86, %p87
    %p89 = scmp.ne.s32.totalorder %s80, %s81
    %p90 = scmp.eq.s32.totalorder %s14, 0
    %p91 = por %p89, %p90
    %p92 = scmp.ne.s32.totalorder %s80, %s81
    %p93 = scmp.eq.s32.totalorder %s15, 1
    %p94 = por %p92, %p93
    %p96 = scmp.ne.s32.totalorder %s81, %s95
    %p97 = scmp.eq.s32.totalorder %s15, 0
    %p98 = por %p96, %p97
    %s99 = ssub.s32 %s16, %s28
    %s100 = ssub.s32 %s17, %s24
    %s101 = sor.u32 %s99, %s100
    %p102 = scmp.eq.s32.totalorder %s101, 0
    %s104 = sadd.s32 %s103, 1
    %s105 = scalar_select %p102, %s103, %s104
    %p108 = pneg %p102
    %p109 = scmp.eq.s32.totalorder %s9, 1
    %p110 = por %p108, %p109
    %p111 = scmp.ne.s32.totalorder %s103, %s106
    %p112 = scmp.eq.s32.totalorder %s9, 0
    %p113 = por %p111, %p112
    %p114 = scmp.ne.s32.totalorder %s103, %s106
    %p115 = scmp.eq.s32.totalorder %s14, 1
    %p116 = por %p114, %p115
    %p117 = scmp.ne.s32.totalorder %s106, %s107
    %p118 = scmp.eq.s32.totalorder %s14, 0
    %p119 = por %p117, %p118
    %p120 = scmp.ne.s32.totalorder %s106, %s107
    %p121 = scmp.eq.s32.totalorder %s15, 1
    %p122 = por %p120, %p121
    %p124 = scmp.ne.s32.totalorder %s107, %s123
    %p125 = scmp.eq.s32.totalorder %s15, 0
    %p126 = por %p124, %p125
    %p127 = scmp.le.s32.totalorder 1, %s9
    %p128 = scmp.lt.s32.totalorder %s9, 3
    %p129 = pnand %p127, %p128
    %p130 = pneg %p129
    // Predicated region
    $region9: #{strided_conv_block.3} parent=5 // pred_check
      _
    $region10: #{strided_conv_block.3} parent=5 // pred_check_branch
      %132 = sbr.rel (%p129) target = $region12
    $region11: #{strided_conv_block.3} parent=5 // pred_region
      %s133 = ssub.s32 %s9, 1
      // Predicated region
      $region13: #{strided_conv_block.3} parent=11 // pred_check
        %p134 = pneg %p70
      $region14: #{strided_conv_block.3} parent=11 // pred_check_branch
        %136 = sbr.rel (%p134) target = $region16
      $region15: #{strided_conv_block.3} parent=11 // pred_region
        _
      $region16: #{strided_conv_block.3} parent=11 // pred_fallthru
        _
      // Predicated region
      $region17: #{strided_conv_block.3} parent=11 // pred_check
        %p137 = pneg %p91
      $region18: #{strided_conv_block.3} parent=11 // pred_check_branch
        %139 = sbr.rel (%p137) target = $region20
      $region19: #{strided_conv_block.3} parent=11 // pred_region
        _
      $region20: #{strided_conv_block.3} parent=11 // pred_fallthru
        _
    $region12: #{strided_conv_block.3} parent=5 // pred_fallthru
      _
    %p140 = scmp.lt.s32.totalorder %s9, 2
    // Predicated region
    $region21: #{strided_conv_block.3} parent=5 // pred_check
      %p141 = pneg %p140
    $region22: #{strided_conv_block.3} parent=5 // pred_check_branch
      %143 = sbr.rel (%p141) target = $region24
    $region23: #{strided_conv_block.3} parent=5 // pred_region
      // Predicated region
      $region25: #{strided_conv_block.3} parent=23 // pred_check
        %p144 = pneg %p43
      $region26: #{strided_conv_block.3} parent=23 // pred_check_branch
        %146 = sbr.rel (%p144) target = $region28
      $region27: #{strided_conv_block.3} parent=23 // pred_region
        %p147 = scmp.lt.s32.totalorder %s16, 1
        %s148 = scalar_select %p147, %s16, 1
        %p149 = scmp.lt.s32.totalorder %s17, 0
        %s150 = scalar_select %p149, %s17, 0
        %s151 = sadd.s32 %s150, %s148
        %s152 = smul.addr %s151, 8
        %s153 = scalar_lea.vmem %s0, %s152
      $region28: #{strided_conv_block.3} parent=23 // pred_fallthru
        _
    $region24: #{strided_conv_block.3} parent=5 // pred_fallthru
      _
    %p154 = scmp.le.s32.totalorder 1, %s9
    %p155 = scmp.lt.s32.totalorder %s9, 3
    %p156 = pnand %p154, %p155
    %p157 = pneg %p156
    // Predicated region
    $region29: #{strided_conv_block.3} parent=5 // pred_check
      _
    $region30: #{strided_conv_block.3} parent=5 // pred_check_branch
      %159 = sbr.rel (%p156) target = $region32
    $region31: #{strided_conv_block.3} parent=5 // pred_region
      %s160 = ssub.s32 %s9, 1
      %p161 = scmp.lt.s32.totalorder %s18, 1
      %s162 = scalar_select %p161, %s18, 1
      %p163 = scmp.lt.s32.totalorder %s19, 0
      %s164 = scalar_select %p163, %s19, 0
      %s165 = sadd.s32 %s164, %s162
      %s166 = smul.addr %s165, 8
      %s167 = scalar_lea.vmem %s0, %s166
      %p168 = pneg %p49
      %p169 = pneg %p46
      %p170 = pneg %p70
      %p171 = pneg %p67
      %p172 = pneg %p91
      %p173 = pneg %p88
      %p174 = pneg %p119
      %p175 = pneg %p116
      %p176 = scmp.lt.s32.totalorder %s18, 1
      %s177 = scalar_select %p176, %s18, 1
      %p178 = scmp.lt.s32.totalorder %s19, 0
      %s179 = scalar_select %p178, %s19, 0
      %s180 = sadd.s32 %s179, %s177
      %s181 = smul.addr %s180, 8
      %s182 = scalar_lea.vmem %s3, %s181
      %p183 = scmp.lt.s32.totalorder %s18, 1
      %s184 = scalar_select %p183, %s18, 1
      %p185 = scmp.lt.s32.totalorder %s19, 0
      %s186 = scalar_select %p185, %s19, 0
      %s187 = sadd.s32 %s186, %s184
      %s188 = smul.addr %s187, 8
      %s189 = scalar_lea.vmem %s0, %s188
      %p190 = scmp.lt.s32.totalorder %s18, 1
      %s191 = scalar_select %p190, %s18, 1
      %p192 = scmp.lt.s32.totalorder %s19, 0
      %s193 = scalar_select %p192, %s19, 0
      %s194 = sadd.s32 %s193, %s191
      %s195 = smul.addr %s194, 8
      %s196 = scalar_lea.vmem %s3, %s195
      %v197 = vld [vmem:[%s189] sm:$0xff]
      %v198 = vld [vmem:[%s1] sm:$0xff]
      %200 = vset.pattern.permute.xlu0 0
      %201 = vperm.xlu0 %200, %v198
      %v202 = vpop.permute.xlu0 %201
      %v204 = vmul.f32 %v197, %v202
      %v205 = vld [vmem:[%s2] sm:$0xff]
      %207 = vset.pattern.permute.xlu0 0
      %208 = vperm.xlu0 %207, %v205
      %v209 = vpop.permute.xlu0 %208
      %v211 = vadd.f32 %v204, %v209
      %v212 = vmax.f32 %v211, 0.0
      %vm213 = vcmask 523264
      %214 = vst.msk [vmem:[%s196] sm:$0xff] %vm213, %v212
      %p215 = scmp.lt.s32.totalorder %s18, 1
      %s216 = scalar_select %p215, %s18, 1
      %p217 = scmp.lt.s32.totalorder %s19, 0
      %s218 = scalar_select %p217, %s19, 0
      %s219 = sadd.s32 %s218, %s216
      %s220 = smul.addr %s219, 8
      %s221 = scalar_lea.vmem %s3, %s220
      // Predicated region
      $region33: #{strided_conv_block.3} parent=31 // pred_check
        %p222 = pneg %p116
      $region34: #{strided_conv_block.3} parent=31 // pred_check_branch
        %224 = sbr.rel (%p222) target = $region36
      $region35: #{strided_conv_block.3} parent=31 // pred_region
        _
      $region36: #{strided_conv_block.3} parent=31 // pred_fallthru
        _
    $region32: #{strided_conv_block.3} parent=5 // pred_fallthru
      _
    %p225 = scmp.le.s32.totalorder 2, %s9
    // Predicated region
    $region37: #{strided_conv_block.3} parent=5 // pred_check
      %p226 = pneg %p225
    $region38: #{strided_conv_block.3} parent=5 // pred_check_branch
      %228 = sbr.rel (%p226) target = $region40
    $region39: #{strided_conv_block.3} parent=5 // pred_region
      %s229 = ssub.s32 %s9, 2
      // Predicated region
      $region41: #{strided_conv_block.3} parent=39 // pred_check
        %p230 = pneg %p122
      $region42: #{strided_conv_block.3} parent=39 // pred_check_branch
        %232 = sbr.rel (%p230) target = $region44
      $region43: #{strided_conv_block.3} parent=39 // pred_region
        %p233 = scmp.lt.s32.totalorder %s20, 1
        %s234 = scalar_select %p233, %s20, 1
        %p235 = scmp.lt.s32.totalorder %s21, 0
        %s236 = scalar_select %p235, %s21, 0
        %s237 = sadd.s32 %s236, %s234
        %s238 = smul.addr %s237, 8
        %s239 = scalar_lea.vmem %s3, %s238
      $region44: #{strided_conv_block.3} parent=39 // pred_fallthru
        _
    $region40: #{strided_conv_block.3} parent=5 // pred_fallthru
      _
  $region6: #{strided_conv_block.3} parent=0 // loop_footer
    %s13 = sadd.s32 1, %s9
  $region7: #{strided_conv_block.3} parent=0 // loop_footer_branch
    %8 = sbr.rel target = $region3
  $region8: #{strided_conv_block.3} parent=0 // loop_exit
    _

// kernel: strided_conv_block.2
$region0: #{strided_conv_block.2}
  #allocation0 [shape = 'u32[]', space=smem, size = 0x4, offset = 0x4, fixed_abs, tag = 'smem constant byte address 0x4 - core index']
  #allocation1 [shape = 'u32[144,128]{1,0:T(1,128)}', space=vmem, size = 0x12000, scoped, tag = 'internal scratch']
  %s0 = inlined_call_operand.vmem [shape: f32[2,9,9,16], index: 0, kind: input, shape index: {}]
  %s1 = inlined_call_operand.vmem [shape: f32[4,16,8], index: 1, kind: input, shape index: {}]
  %s2 = inlined_call_operand.vmem [shape: f32[2,8,64], index: 2, kind: output, shape index: {0}]
  %s3 = inlined_call_operand.vmem [shape: f32[1,2,8], index: 3, kind: output, shape index: {1}]
  %4 = xla_tuple %s2, %s3
  %s5 = sld [smem:[#allocation0]]
  $region26: #{strided_conv_block.2} parent=0
    _
  %s7 = ssub.s32 1, %s5
  %s8 = scalar_select 0, %s7, %s5
  // Predicated region
  $region2: #{strided_conv_block.2} parent=0 // pred_check
    _
  $region3: #{strided_conv_block.2} parent=0 // pred_check_branch
    %10 = sbr.rel (0) target = $region5
  $region4: #{strided_conv_block.2} parent=0 // pred_region
    _
  $region5: #{strided_conv_block.2} parent=0 // pred_fallthru
    _
  // Predicated region
  $region6: #{strided_conv_block.2} parent=0 // pred_check
    _
  $region7: #{strided_conv_block.2} parent=0 // pred_check_branch
    %12 = sbr.rel (0) target = $region9
  $region8: #{strided_conv_block.2} parent=0 // pred_region
    _
  $region9: #{strided_conv_block.2} parent=0 // pred_fallthru
    _
  %v13 = vld [vmem:[%s0] sm:$0xff]
  %v14 = vld [vmem:[%s0 + $0x8] sm:$0x1]
  %v15 = vld [vmem:[%s0 + $0x10] sm:$0xff]
  %v16 = vld [vmem:[%s0 + $0x18] sm:$0x1]
  %v17 = vld [vmem:[%s0 + $0x20] sm:$0xff]
  %v18 = vld [vmem:[%s0 + $0x28] sm:$0x1]
  %v19 = vld [vmem:[%s0 + $0x30] sm:$0xff]
  %v20 = vld [vmem:[%s0 + $0x38] sm:$0x1]
  %v21 = vld [vmem:[%s0 + $0x40] sm:$0xff]
  %v22 = vld [vmem:[%s0 + $0x48] sm:$0x1]
  %v23 = vld [vmem:[%s0 + $0x50] sm:$0xff]
  %v24 = vld [vmem:[%s0 + $0x58] sm:$0x1]
  %v25 = vld [vmem:[%s0 + $0x60] sm:$0xff]
  %v26 = vld [vmem:[%s0 + $0x68] sm:$0x1]
  %v27 = vld [vmem:[%s0 + $0x70] sm:$0xff]
  %v28 = vld [vmem:[%s0 + $0x78] sm:$0x1]
  %v29 = vld [vmem:[%s0 + $0x80] sm:$0xff]
  %v30 = vld [vmem:[%s0 + $0x88] sm:$0x1]
  %v31 = vld [vmem:[%s0 + $0x90] sm:$0xff]
  %v32 = vld [vmem:[%s0 + $0x98] sm:$0x1]
  %v33 = vld [vmem:[%s0 + $0xa0] sm:$0xff]
  %v34 = vld [vmem:[%s0 + $0xa8] sm:$0x1]
  %v35 = vld [vmem:[%s0 + $0xb0] sm:$0xff]
  %v36 = vld [vmem:[%s0 + $0xb8] sm:$0x1]
  %v37 = vld [vmem:[%s0 + $0xc0] sm:$0xff]
  %v38 = vld [vmem:[%s0 + $0xc8] sm:$0x1]
  %v39 = vld [vmem:[%s0 + $0xd0] sm:$0xff]
  %v40 = vld [vmem:[%s0 + $0xd8] sm:$0x1]
  %v41 = vld [vmem:[%s0 + $0xe0] sm:$0xff]
  %v42 = vld [vmem:[%s0 + $0xe8] sm:$0x1]
  %v43 = vld [vmem:[%s0 + $0xf0] sm:$0xff]
  %v44 = vld [vmem:[%s0 + $0xf8] sm:$0x1]
  %v45 = vld [vmem:[%s0 + $0x100] sm:$0xff]
  %v46 = vld [vmem:[%s0 + $0x108] sm:$0x1]
  %v47 = vld [vmem:[%s0 + $0x110] sm:$0xff]
  %v48 = vld [vmem:[%s0 + $0x118] sm:$0x1]
  %v49 = vld [vmem:[%s1] sm:$0xff]
  %v50 = vld [vmem:[%s1 + $0x8] sm:$0xff]
  %vm83 = vcmask 1046528
  %v84 = vrot.slane %v13, 1
  %v85 = vrot.slane %v14, 1
  %v86 = vsel %vm83, %v84, %v85
  %v87 = vrot.slane %v15, 1
  %v88 = vrot.slane %v16, 1
  %v89 = vsel %vm83, %v87, %v88
  %v90 = vrot.slane %v17, 1
  %v91 = vrot.slane %v18, 1
  %v92 = vsel %vm83, %v90, %v91
  %v93 = vrot.slane %v19, 1
  %v94 = vrot.slane %v20, 1
  %v95 = vsel %vm83, %v93, %v94
  %v96 = vrot.slane %v21, 1
  %v97 = vrot.slane %v22, 1
  %v98 = vsel %vm83, %v96, %v97
  %v99 = vrot.slane %v23, 1
  %v100 = vrot.slane %v24, 1
  %v101 = vsel %vm83, %v99, %v100
  %v102 = vrot.slane %v25, 1
  %v103 = vrot.slane %v26, 1
  %v104 = vsel %vm83, %v102, %v103
  %v105 = vrot.slane %v27, 1
  %v106 = vrot.slane %v28, 1
  %v107 = vsel %vm83, %v105, %v106
  %v108 = vrot.slane %v31, 1
  %v109 = vrot.slane %v32, 1
  %v110 = vsel %vm83, %v108, %v109
  %v111 = vrot.slane %v33, 1
  %v112 = vrot.slane %v34, 1
  %v113 = vsel %vm83, %v111, %v112
  %v114 = vrot.slane %v35, 1
  %v115 = vrot.slane %v36, 1
  %v116 = vsel %vm83, %v114, %v115
  %v117 = vrot.slane %v37, 1
  %v118 = vrot.slane %v38, 1
  %v119 = vsel %vm83, %v117, %v118
  %v120 = vrot.slane %v39, 1
  %v121 = vrot.slane %v40, 1
  %v122 = vsel %vm83, %v120, %v121
  %v123 = vrot.slane %v41, 1
  %v124 = vrot.slane %v42, 1
  %v125 = vsel %vm83, %v123, %v124
  %v126 = vrot.slane %v43, 1
  %v127 = vrot.slane %v44, 1
  %v128 = vsel %vm83, %v126, %v127
  %v129 = vrot.slane %v45, 1
  %v130 = vrot.slane %v46, 1
  %v131 = vsel %vm83, %v129, %v130
  %s132 = scalar_lea.vmem %s1, 16
  %v133 = vld [vmem:[%s132] sm:$0xff]
  %v134 = vld [vmem:[%s132 + $0x8] sm:$0xff]
  %vm135 = vcmask 130048
  %v136 = vsel %vm135, %v86, 0
  %v138 = vsel %vm135, %v89, 0
  %v140 = vsel %vm135, %v92, 0
  %v142 = vsel %vm135, %v95, 0
  %v144 = vsel %vm135, %v98, 0
  %v146 = vsel %vm135, %v101, 0
  %v148 = vsel %vm135, %v104, 0
  %v150 = vsel %vm135, %v107, 0
  %v152 = vsel %vm135, %v110, 0
  %v154 = vsel %vm135, %v113, 0
  %v156 = vsel %vm135, %v116, 0
  %v158 = vsel %vm135, %v119, 0
  %v160 = vsel %vm135, %v122, 0
  %v162 = vsel %vm135, %v125, 0
  %v164 = vsel %vm135, %v128, 0
  %v166 = vsel %vm135, %v131, 0
  %168 = vmatprep.subr.mxu0 0.0
  %169 = vmatpush1.msra.mxu0 %v133
  %170 = vmatprep.subr.mxu0 0.0
  %171 = vmatpush1.msra.mxu0 %v134
  %172 = vmatprep.subr.mxu0 0.0
  %173 = vmatpush1.msra.mxu0 0.0
  %174 = vmatprep.subr.mxu0 0.0
  %175 = vmatpush1.msra.mxu0 0.0
  %176 = vmatprep.subr.mxu0 0.0
  %177 = vmatpush1.msra.mxu0 0.0
  %178 = vmatprep.subr.mxu0 0.0
  %179 = vmatpush1.msra.mxu0 0.0
  %180 = vmatprep.subr.mxu0 0.0
  %181 = vmatpush1.msra.mxu0 0.0
  %182 = vmatprep.subr.mxu0 0.0
  %183 = vmatpush1.msra.mxu0 0.0
  %184 = vmatprep.subr.mxu0 0.0
  %185 = vmatpush1.msra.mxu0 0.0
  %186 = vmatprep.subr.mxu0 0.0
  %187 = vmatpush1.msra.mxu0 0.0
  %188 = vmatprep.subr.mxu0 0.0
  %189 = vmatpush1.msra.mxu0 0.0
  %190 = vmatprep.subr.mxu0 0.0
  %191 = vmatpush1.msra.mxu0 0.0
  %192 = vmatprep.subr.mxu0 0.0
  %193 = vmatpush1.msra.mxu0 0.0
  %194 = vmatprep.subr.mxu0 0.0
  %195 = vmatpush1.msra.mxu0 0.0
  %196 = vmatprep.subr.mxu0 0.0
  %197 = vmatpush1.msra.mxu0 0.0
  %198 = vmatprep.subr.mxu0 0.0
  %199 = vmatpush1.msra.mxu0 0.0
  %200 = vmatprep.subr.mxu0 0.0
  %201 = vmatpush1.msra.mxu0 0.0
  %202 = vmatprep.subr.mxu0 0.0
  %203 = vmatpush1.msra.mxu0 0.0
  %204 = vmatprep.subr.mxu0 0.0
  %205 = vmatpush1.msra.mxu0 0.0
  %206 = vmatprep.subr.mxu0 0.0
  %207 = vmatpush1.msra.mxu0 0.0
  %208 = vmatprep.subr.mxu0 0.0
  %209 = vmatpush1.msra.mxu0 0.0
  %210 = vmatprep.subr.mxu0 0.0
  %211 = vmatpush1.msra.mxu0 0.0
  %212 = vmatprep.subr.mxu0 0.0
  %213 = vmatpush1.msra.mxu0 0.0
  %214 = vmatprep.subr.mxu0 0.0
  %215 = vmatpush1.msra.mxu0 0.0
  %216 = vmatprep.subr.mxu0 0.0
  %217 = vmatpush1.msra.mxu0 0.0
  %218 = vmatprep.subr.mxu0 0.0
  %219 = vmatpush1.msra.mxu0 0.0
  %220 = vmatprep.subr.mxu0 0.0
  %221 = vmatpush1.msra.mxu0 0.0
  %222 = vmatprep.subr.mxu0 0.0
  %223 = vmatpush1.msra.mxu0 0.0
  %224 = vmatprep.subr.mxu0 0.0
  %225 = vmatpush1.msra.mxu0 0.0
  %226 = vmatprep.subr.mxu0 0.0
  %227 = vmatpush1.msra.mxu0 0.0
  %228 = vmatprep.subr.mxu0 0.0
  %229 = vmatpush1.msra.mxu0 0.0
  %230 = vmatprep.subr.mxu0 0.0
  %231 = vmatpush1.msra.mxu0 0.0
  %232 = vmatprep.mubr.f32.mxu0 0.0
  %233 = vmatmul.mubr.f32.gmra.mrb[0].mxu0 %v136
  %v234 = vpop.f32.mrb[0].mxu0
  %v235 = vadd.f32 0.0, %v234
  %v236 = vpop.f32.mrb[0].mxu0
  %237 = vmatprep.mubr.f32.mxu0 0.0
  %238 = vmatmul.mubr.f32.gmra.mrb[0].mxu0 %v138
  %v239 = vpop.f32.mrb[0].mxu0
  %v240 = vadd.f32 0.0, %v239
  %v241 = vpop.f32.mrb[0].mxu0
  %242 = vmatprep.mubr.f32.mxu0 0.0
  %243 = vmatmul.mubr.f32.gmra.mrb[0].mxu0 %v140
  %v244 = vpop.f32.mrb[0].mxu0
  %v245 = vadd.f32 0.0, %v244
  %v246 = vpop.f32.mrb[0].mxu0
  %247 = vmatprep.mubr.f32.mxu0 0.0
  %248 = vmatmul.mubr.f32.gmra.mrb[0].mxu0 %v142
  %v249 = vpop.f32.mrb[0].mxu0
  %v250 = vadd.f32 0.0, %v249
  %v251 = vpop.f32.mrb[0].mxu0
  %252 = vmatprep.mubr.f32.mxu0 0.0
  %253 = vmatmul.mubr.f32.gmra.mrb[0].mxu0 %v144
  %v254 = vpop.f32.mrb[0].mxu0
  %v255 = vadd.f32 0.0, %v254
  %v256 = vpop.f32.mrb[0].mxu0
  %257 = vmatprep.mubr.f32.mxu0 0.0
  %258 = vmatmul.mubr.f32.gmra.mrb[0].mxu0 %v146
  %v259 = vpop.f32.mrb[0].mxu0
  %v260 = vadd.f32 0.0, %v259
  %v261 = vpop.f32.mrb[0].mxu0
  %262 = vmatprep.mubr.f32.mxu0 0.0
  %263 = vmatmul.mubr.f32.gmra.mrb[0].mxu0 %v148
  %v264 = vpop.f32.mrb[0].mxu0
  %v265 = vadd.f32 0.0, %v264
  %v266 = vpop.f32.mrb[0].mxu0
  %267 = vmatprep.mubr.f32.mxu0 0.0
  %268 = vmatmul.mubr.f32.gmra.mrb[0].mxu0 %v150
  %v269 = vpop.f32.mrb[0].mxu0
  %v270 = vadd.f32 0.0, %v269
  %v271 = vpop.f32.mrb[0].mxu0
  %272 = vmatprep.mubr.f32.mxu0 0.0
  %273 = vmatmul.mubr.f32.gmra.mrb[0].mxu0 %v152
  %v274 = vpop.f32.mrb[0].mxu0
  %v275 = vadd.f32 0.0, %v274
  %v276 = vpop.f32.mrb[0].mxu0
  %277 = vmatprep.mubr.f32.mxu0 0.0
  %278 = vmatmul.mubr.f32.gmra.mrb[0].mxu0 %v154
  %v279 = vpop.f32.mrb[0].mxu0
  %v280 = vadd.f32 0.0, %v279
  %v281 = vpop.f32.mrb[0].mxu0
  %282 = vmatprep.mubr.f32.mxu0 0.0
  %283 = vmatmul.mubr.f32.gmra.mrb[0].mxu0 %v156
  %v284 = vpop.f32.mrb[0].mxu0
  %v285 = vadd.f32 0.0, %v284
  %v286 = vpop.f32.mrb[0].mxu0
  %287 = vmatprep.mubr.f32.mxu0 0.0
  %288 = vmatmul.mubr.f32.gmra.mrb[0].mxu0 %v158
  %v289 = vpop.f32.mrb[0].mxu0
  %v290 = vadd.f32 0.0, %v289
  %v291 = vpop.f32.mrb[0].mxu0
  %292 = vmatprep.mubr.f32.mxu0 0.0
  %293 = vmatmul.mubr.f32.gmra.mrb[0].mxu0 %v160
  %v294 = vpop.f32.mrb[0].mxu0
  %v295 = vadd.f32 0.0, %v294
  %v296 = vpop.f32.mrb[0].mxu0
  %297 = vmatprep.mubr.f32.mxu0 0.0
  %298 = vmatmul.mubr.f32.gmra.mrb[0].mxu0 %v162
  %v299 = vpop.f32.mrb[0].mxu0
  %v300 = vadd.f32 0.0, %v299
  %v301 = vpop.f32.mrb[0].mxu0
  %302 = vmatprep.mubr.f32.mxu0 0.0
  %303 = vmatmul.mubr.f32.gmra.mrb[0].mxu0 %v164
  %v304 = vpop.f32.mrb[0].mxu0
  %v305 = vadd.f32 0.0, %v304
  %v306 = vpop.f32.mrb[0].mxu0
  %307 = vmatprep.mubr.f32.mxu0 0.0
  %308 = vmatmul.mubr.f32.gmra.mrb[0].mxu0 %v166
  %v309 = vpop.f32.mrb[0].mxu0
  %v310 = vadd.f32 0.0, %v309
  %v311 = vpop.f32.mrb[0].mxu0
  %312 = vdwg.mxu0
  %v313 = vsel %vm135, %v13, 0
  %v315 = vsel %vm135, %v15, 0
  %v317 = vsel %vm135, %v17, 0
  %v319 = vsel %vm135, %v19, 0
  %v321 = vsel %vm135, %v21, 0
  %v323 = vsel %vm135, %v23, 0
  %v325 = vsel %vm135, %v25, 0
  %v327 = vsel %vm135, %v27, 0
  %v329 = vsel %vm135, %v31, 0
  %v331 = vsel %vm135, %v33, 0
  %v333 = vsel %vm135, %v35, 0
  %v335 = vsel %vm135, %v37, 0
  %v337 = vsel %vm135, %v39, 0
  %v339 = vsel %vm135, %v41, 0
  %v341 = vsel %vm135, %v43, 0
  %v343 = vsel %vm135, %v45, 0
  %345 = vmatprep.subr.mxu0 0.0
  %346 = vmatpush1.msra.mxu0 %v49
  %347 = vmatprep.subr.mxu0 0.0
  %348 = vmatpush1.msra.mxu0 %v50
  %349 = vmatprep.subr.mxu0 0.0
  %350 = vmatpush1.msra.mxu0 0.0
  %351 = vmatprep.subr.mxu0 0.0
  %352 = vmatpush1.msra.mxu0 0.0
  %353 = vmatprep.subr.mxu0 0.0
  %354 = vmatpush1.msra.mxu0 0.0
  %355 = vmatprep.subr.mxu0 0.0
  %356 = vmatpush1.msra.mxu0 0.0
  %357 = vmatprep.subr.mxu0 0.0
  %358 = vmatpush1.msra.mxu0 0.0
  %359 = vmatprep.subr.mxu0 0.0
  %360 = vmatpush1.msra.mxu0 0.0
  %361 = vmatprep.subr.mxu0 0.0
  %362 = vmatpush1.msra.mxu0 0.0
  %363 = vmatprep.subr.mxu0 0.0
  %364 = vmatpush1.msra.mxu0 0.0
  %365 = vmatprep.subr.mxu0 0.0
  %366 = vmatpush1.msra.mxu0 0.0
  %367 = vmatprep.subr.mxu0 0.0
  %368 = vmatpush1.msra.mxu0 0.0
  %369 = vmatprep.subr.mxu0 0.0
  %370 = vmatpush1.msra.mxu0 0.0
  %371 = vmatprep.subr.mxu0 0.0
  %372 = vmatpush1.msra.mxu0 0.0
  %373 = vmatprep.subr.mxu0 0.0
  %374 = vmatpush1.msra.mxu0 0.0
  %375 = vmatprep.subr.mxu0 0.0
  %376 = vmatpush1.msra.mxu0 0.0
  %377 = vmatprep.subr.mxu0 0.0
  %378 = vmatpush1.msra.mxu0 0.0
  %379 = vmatprep.subr.mxu0 0.0
  %380 = vmatpush1.msra.mxu0 0.0
  %381 = vmatprep.subr.mxu0 0.0
  %382 = vmatpush1.msra.mxu0 0.0
  %383 = vmatprep.subr.mxu0 0.0
  %384 = vmatpush1.msra.mxu0 0.0
  %385 = vmatprep.subr.mxu0 0.0
  %386 = vmatpush1.msra.mxu0 0.0
  %387 = vmatprep.subr.mxu0 0.0
  %388 = vmatpush1.msra.mxu0 0.0
  %389 = vmatprep.subr.mxu0 0.0
  %390 = vmatpush1.msra.mxu0 0.0
  %391 = vmatprep.subr.mxu0 0.0
  %392 = vmatpush1.msra.mxu0 0.0
  %393 = vmatprep.subr.mxu0 0.0
  %394 = vmatpush1.msra.mxu0 0.0
  %395 = vmatprep.subr.mxu0 0.0
  %396 = vmatpush1.msra.mxu0 0.0
  %397 = vmatprep.subr.mxu0 0.0
  %398 = vmatpush1.msra.mxu0 0.0
  %399 = vmatprep.subr.mxu0 0.0
  %400 = vmatpush1.msra.mxu0 0.0
  %401 = vmatprep.subr.mxu0 0.0
  %402 = vmatpush1.msra.mxu0 0.0
  %403 = vmatprep.subr.mxu0 0.0
  %404 = vmatpush1.msra.mxu0 0.0
  %405 = vmatprep.subr.mxu0 0.0
  %406 = vmatpush1.msra.mxu0 0.0
  %407 = vmatprep.subr.mxu0 0.0
  %408 = vmatpush1.msra.mxu0 0.0
  %409 = vmatprep.mubr.f32.mxu0 0.0
  %410 = vmatmul.mubr.f32.gmra.mrb[0].mxu0 %v313
  %v411 = vpop.f32.mrb[0].mxu0
  %v412 = vadd.f32 %v235, %v411
  %v413 = vpop.f32.mrb[0].mxu0
  %414 = vmatprep.mubr.f32.mxu0 0.0
  %415 = vmatmul.mubr.f32.gmra.mrb[0].mxu0 %v315
  %v416 = vpop.f32.mrb[0].mxu0
  %v417 = vadd.f32 %v240, %v416
  %v418 = vpop.f32.mrb[0].mxu0
  %419 = vmatprep.mubr.f32.mxu0 0.0
  %420 = vmatmul.mubr.f32.gmra.mrb[0].mxu0 %v317
  %v421 = vpop.f32.mrb[0].mxu0
  %v422 = vadd.f32 %v245, %v421
  %v423 = vpop.f32.mrb[0].mxu0
  %424 = vmatprep.mubr.f32.mxu0 0.0
  %425 = vmatmul.mubr.f32.gmra.mrb[0].mxu0 %v319
  %v426 = vpop.f32.mrb[0].mxu0
  %v427 = vadd.f32 %v250, %v426
  %v428 = vpop.f32.mrb[0].mxu0
  %429 = vmatprep.mubr.f32.mxu0 0.0
  %430 = vmatmul.mubr.f32.gmra.mrb[0].mxu0 %v321
  %v431 = vpop.f32.mrb[0].mxu0
  %v432 = vadd.f32 %v255, %v431
  %v433 = vpop.f32.mrb[0].mxu0
  %434 = vmatprep.mubr.f32.mxu0 0.0
  %435 = vmatmul.mubr.f32.gmra.mrb[0].mxu0 %v323
  %v436 = vpop.f32.mrb[0].mxu0
  %v437 = vadd.f32 %v260, %v436
  %v438 = vpop.f32.mrb[0].mxu0
  %439 = vmatprep.mubr.f32.mxu0 0.0
  %440 = vmatmul.mubr.f32.gmra.mrb[0].mxu0 %v325
  %v441 = vpop.f32.mrb[0].mxu0
  %v442 = vadd.f32 %v265, %v441
  %v443 = vpop.f32.mrb[0].mxu0
  %444 = vmatprep.mubr.f32.mxu0 0.0
  %445 = vmatmul.mubr.f32.gmra.mrb[0].mxu0 %v327
  %v446 = vpop.f32.mrb[0].mxu0
  %v447 = vadd.f32 %v270, %v446
  %v448 = vpop.f32.mrb[0].mxu0
  %449 = vmatprep.mubr.f32.mxu0 0.0
  %450 = vmatmul.mubr.f32.gmra.mrb[0].mxu0 %v329
  %v451 = vpop.f32.mrb[0].mxu0
  %v452 = vadd.f32 %v275, %v451
  %v453 = vpop.f32.mrb[0].mxu0
  %454 = vmatprep.mubr.f32.mxu0 0.0
  %455 = vmatmul.mubr.f32.gmra.mrb[0].mxu0 %v331
  %v456 = vpop.f32.mrb[0].mxu0
  %v457 = vadd.f32 %v280, %v456
  %v458 = vpop.f32.mrb[0].mxu0
  %459 = vmatprep.mubr.f32.mxu0 0.0
  %460 = vmatmul.mubr.f32.gmra.mrb[0].mxu0 %v333
  %v461 = vpop.f32.mrb[0].mxu0
  %v462 = vadd.f32 %v285, %v461
  %v463 = vpop.f32.mrb[0].mxu0
  %464 = vmatprep.mubr.f32.mxu0 0.0
  %465 = vmatmul.mubr.f32.gmra.mrb[0].mxu0 %v335
  %v466 = vpop.f32.mrb[0].mxu0
  %v467 = vadd.f32 %v290, %v466
  %v468 = vpop.f32.mrb[0].mxu0
  %469 = vmatprep.mubr.f32.mxu0 0.0
  %470 = vmatmul.mubr.f32.gmra.mrb[0].mxu0 %v337
  %v471 = vpop.f32.mrb[0].mxu0
  %v472 = vadd.f32 %v295, %v471
  %v473 = vpop.f32.mrb[0].mxu0
  %474 = vmatprep.mubr.f32.mxu0 0.0
  %475 = vmatmul.mubr.f32.gmra.mrb[0].mxu0 %v339
  %v476 = vpop.f32.mrb[0].mxu0
  %v477 = vadd.f32 %v300, %v476
  %v478 = vpop.f32.mrb[0].mxu0
  %479 = vmatprep.mubr.f32.mxu0 0.0
  %480 = vmatmul.mubr.f32.gmra.mrb[0].mxu0 %v341
  %v481 = vpop.f32.mrb[0].mxu0
  %v482 = vadd.f32 %v305, %v481
  %v483 = vpop.f32.mrb[0].mxu0
  %484 = vmatprep.mubr.f32.mxu0 0.0
  %485 = vmatmul.mubr.f32.gmra.mrb[0].mxu0 %v343
  %v486 = vpop.f32.mrb[0].mxu0
  %v487 = vadd.f32 %v310, %v486
  %v488 = vpop.f32.mrb[0].mxu0
  %489 = vdwg.mxu0
  %s490 = scalar_lea.vmem %s1, 32
  %v491 = vld [vmem:[%s490] sm:$0xff]
  %v492 = vld [vmem:[%s490 + $0x8] sm:$0xff]
  %v494 = vsel %vm135, %v29, 0
  %v497 = vsel %vm135, %v47, 0
  %499 = vmatprep.subr.mxu0 0.0
  %500 = vmatpush1.msra.mxu0 %v491
  %501 = vmatprep.subr.mxu0 0.0
  %502 = vmatpush1.msra.mxu0 %v492
  %503 = vmatprep.subr.mxu0 0.0
  %504 = vmatpush1.msra.mxu0 0.0
  %505 = vmatprep.subr.mxu0 0.0
  %506 = vmatpush1.msra.mxu0 0.0
  %507 = vmatprep.subr.mxu0 0.0
  %508 = vmatpush1.msra.mxu0 0.0
  %509 = vmatprep.subr.mxu0 0.0
  %510 = vmatpush1.msra.mxu0 0.0
  %511 = vmatprep.subr.mxu0 0.0
  %512 = vmatpush1.msra.mxu0 0.0
  %513 = vmatprep.subr.mxu0 0.0
  %514 = vmatpush1.msra.mxu0 0.0
  %515 = vmatprep.subr.mxu0 0.0
  %516 = vmatpush1.msra.mxu0 0.0
  %517 = vmatprep.subr.mxu0 0.0
  %518 = vmatpush1.msra.mxu0 0.0
  %519 = vmatprep.subr.mxu0 0.0
  %520 = vmatpush1.msra.mxu0 0.0
  %521 = vmatprep.subr.mxu0 0.0
  %522 = vmatpush1.msra.mxu0 0.0
  %523 = vmatprep.subr.mxu0 0.0
  %524 = vmatpush1.msra.mxu0 0.0
  %525 = vmatprep.subr.mxu0 0.0
  %526 = vmatpush1.msra.mxu0 0.0
  %527 = vmatprep.subr.mxu0 0.0
  %528 = vmatpush1.msra.mxu0 0.0
  %529 = vmatprep.subr.mxu0 0.0
  %530 = vmatpush1.msra.mxu0 0.0
  %531 = vmatprep.subr.mxu0 0.0
  %532 = vmatpush1.msra.mxu0 0.0
  %533 = vmatprep.subr.mxu0 0.0
  %534 = vmatpush1.msra.mxu0 0.0
  %535 = vmatprep.subr.mxu0 0.0
  %536 = vmatpush1.msra.mxu0 0.0
  %537 = vmatprep.subr.mxu0 0.0
  %538 = vmatpush1.msra.mxu0 0.0
  %539 = vmatprep.subr.mxu0 0.0
  %540 = vmatpush1.msra.mxu0 0.0
  %541 = vmatprep.subr.mxu0 0.0
  %542 = vmatpush1.msra.mxu0 0.0
  %543 = vmatprep.subr.mxu0 0.0
  %544 = vmatpush1.msra.mxu0 0.0
  %545 = vmatprep.subr.mxu0 0.0
  %546 = vmatpush1.msra.mxu0 0.0
  %547 = vmatprep.subr.mxu0 0.0
  %548 = vmatpush1.msra.mxu0 0.0
  %549 = vmatprep.subr.mxu0 0.0
  %550 = vmatpush1.msra.mxu0 0.0
  %551 = vmatprep.subr.mxu0 0.0
  %552 = vmatpush1.msra.mxu0 0.0
  %553 = vmatprep.subr.mxu0 0.0
  %554 = vmatpush1.msra.mxu0 0.0
  %555 = vmatprep.subr.mxu0 0.0
  %556 = vmatpush1.msra.mxu0 0.0
  %557 = vmatprep.subr.mxu0 0.0
  %558 = vmatpush1.msra.mxu0 0.0
  %559 = vmatprep.subr.mxu0 0.0
  %560 = vmatpush1.msra.mxu0 0.0
  %561 = vmatprep.subr.mxu0 0.0
  %562 = vmatpush1.msra.mxu0 0.0
  %563 = vmatprep.mubr.f32.mxu0 0.0
  %564 = vmatmul.mubr.f32.gmra.mrb[0].mxu0 %v315
  %v565 = vpop.f32.mrb[0].mxu0
  %v566 = vadd.f32 0.0, %v565
  %v567 = vpop.f32.mrb[0].mxu0
  %568 = vmatprep.mubr.f32.mxu0 0.0
  %569 = vmatmul.mubr.f32.gmra.mrb[0].mxu0 %v317
  %v570 = vpop.f32.mrb[0].mxu0
  %v571 = vadd.f32 0.0, %v570
  %v572 = vpop.f32.mrb[0].mxu0
  %573 = vmatprep.mubr.f32.mxu0 0.0
  %574 = vmatmul.mubr.f32.gmra.mrb[0].mxu0 %v319
  %v575 = vpop.f32.mrb[0].mxu0
  %v576 = vadd.f32 0.0, %v575
  %v577 = vpop.f32.mrb[0].mxu0
  %578 = vmatprep.mubr.f32.mxu0 0.0
  %579 = vmatmul.mubr.f32.gmra.mrb[0].mxu0 %v321
  %v580 = vpop.f32.mrb[0].mxu0
  %v581 = vadd.f32 0.0, %v580
  %v582 = vpop.f32.mrb[0].mxu0
  %583 = vmatprep.mubr.f32.mxu0 0.0
  %584 = vmatmul.mubr.f32.gmra.mrb[0].mxu0 %v323
  %v585 = vpop.f32.mrb[0].mxu0
  %v586 = vadd.f32 0.0, %v585
  %v587 = vpop.f32.mrb[0].mxu0
  %588 = vmatprep.mubr.f32.mxu0 0.0
  %589 = vmatmul.mubr.f32.gmra.mrb[0].mxu0 %v325
  %v590 = vpop.f32.mrb[0].mxu0
  %v591 = vadd.f32 0.0, %v590
  %v592 = vpop.f32.mrb[0].mxu0
  %593 = vmatprep.mubr.f32.mxu0 0.0
  %594 = vmatmul.mubr.f32.gmra.mrb[0].mxu0 %v327
  %v595 = vpop.f32.mrb[0].mxu0
  %v596 = vadd.f32 0.0, %v595
  %v597 = vpop.f32.mrb[0].mxu0
  %598 = vmatprep.mubr.f32.mxu0 0.0
  %599 = vmatmul.mubr.f32.gmra.mrb[0].mxu0 %v494
  %v600 = vpop.f32.mrb[0].mxu0
  %v601 = vadd.f32 0.0, %v600
  %v602 = vpop.f32.mrb[0].mxu0
  %603 = vmatprep.mubr.f32.mxu0 0.0
  %604 = vmatmul.mubr.f32.gmra.mrb[0].mxu0 %v331
  %v605 = vpop.f32.mrb[0].mxu0
  %v606 = vadd.f32 0.0, %v605
  %v607 = vpop.f32.mrb[0].mxu0
  %608 = vmatprep.mubr.f32.mxu0 0.0
  %609 = vmatmul.mubr.f32.gmra.mrb[0].mxu0 %v333
  %v610 = vpop.f32.mrb[0].mxu0
  %v611 = vadd.f32 0.0, %v610
  %v612 = vpop.f32.mrb[0].mxu0
  %613 = vmatprep.mubr.f32.mxu0 0.0
  %614 = vmatmul.mubr.f32.gmra.mrb[0].mxu0 %v335
  %v615 = vpop.f32.mrb[0].mxu0
  %v616 = vadd.f32 0.0, %v615
  %v617 = vpop.f32.mrb[0].mxu0
  %618 = vmatprep.mubr.f32.mxu0 0.0
  %619 = vmatmul.mubr.f32.gmra.mrb[0].mxu0 %v337
  %v620 = vpop.f32.mrb[0].mxu0
  %v621 = vadd.f32 0.0, %v620
  %v622 = vpop.f32.mrb[0].mxu0
  %623 = vmatprep.mubr.f32.mxu0 0.0
  %624 = vmatmul.mubr.f32.gmra.mrb[0].mxu0 %v339
  %v625 = vpop.f32.mrb[0].mxu0
  %v626 = vadd.f32 0.0, %v625
  %v627 = vpop.f32.mrb[0].mxu0
  %628 = vmatprep.mubr.f32.mxu0 0.0
  %629 = vmatmul.mubr.f32.gmra.mrb[0].mxu0 %v341
  %v630 = vpop.f32.mrb[0].mxu0
  %v631 = vadd.f32 0.0, %v630
  %v632 = vpop.f32.mrb[0].mxu0
  %633 = vmatprep.mubr.f32.mxu0 0.0
  %634 = vmatmul.mubr.f32.gmra.mrb[0].mxu0 %v343
  %v635 = vpop.f32.mrb[0].mxu0
  %v636 = vadd.f32 0.0, %v635
  %v637 = vpop.f32.mrb[0].mxu0
  %638 = vmatprep.mubr.f32.mxu0 0.0
  %639 = vmatmul.mubr.f32.gmra.mrb[0].mxu0 %v497
  %v640 = vpop.f32.mrb[0].mxu0
  %v641 = vadd.f32 0.0, %v640
  %v642 = vpop.f32.mrb[0].mxu0
  %643 = vdwg.mxu0
  %v644 = vadd.f32 %v412, %v566
  %v645 = vadd.f32 %v417, %v571
  %v646 = vadd.f32 %v422, %v576
  %v647 = vadd.f32 %v427, %v581
  %v648 = vadd.f32 %v432, %v586
  %v649 = vadd.f32 %v437, %v591
  %v650 = vadd.f32 %v442, %v596
  %v651 = vadd.f32 %v447, %v601
  %v652 = vadd.f32 %v452, %v606
  %v653 = vadd.f32 %v457, %v611
  %v654 = vadd.f32 %v462, %v616
  %v655 = vadd.f32 %v467, %v621
  %v656 = vadd.f32 %v472, %v626
  %v657 = vadd.f32 %v477, %v631
  %v658 = vadd.f32 %v482, %v636
  %v659 = vadd.f32 %v487, %v641
  %v662 = vrot.slane %v29, 1
  %v663 = vrot.slane %v30, 1
  %v664 = vsel %vm83, %v662, %v663
  %v665 = vrot.slane %v47, 1
  %v666 = vrot.slane %v48, 1
  %v667 = vsel %vm83, %v665, %v666
  %s668 = scalar_lea.vmem %s1, 48
  %v669 = vld [vmem:[%s668] sm:$0xff]
  %v670 = vld [vmem:[%s668 + $0x8] sm:$0xff]
  %v671 = vsel %vm135, %v664, 0
  %v673 = vsel %vm135, %v667, 0
  %675 = vmatprep.subr.mxu0 0.0
  %676 = vmatpush1.msra.mxu0 %v669
  %677 = vmatprep.subr.mxu0 0.0
  %678 = vmatpush1.msra.mxu0 %v670
  %679 = vmatprep.subr.mxu0 0.0
  %680 = vmatpush1.msra.mxu0 0.0
  %681 = vmatprep.subr.mxu0 0.0
  %682 = vmatpush1.msra.mxu0 0.0
  %683 = vmatprep.subr.mxu0 0.0
  %684 = vmatpush1.msra.mxu0 0.0
  %685 = vmatprep.subr.mxu0 0.0
  %686 = vmatpush1.msra.mxu0 0.0
  %687 = vmatprep.subr.mxu0 0.0
  %688 = vmatpush1.msra.mxu0 0.0
  %689 = vmatprep.subr.mxu0 0.0
  %690 = vmatpush1.msra.mxu0 0.0
  %691 = vmatprep.subr.mxu0 0.0
  %692 = vmatpush1.msra.mxu0 0.0
  %693 = vmatprep.subr.mxu0 0.0
  %694 = vmatpush1.msra.mxu0 0.0
  %695 = vmatprep.subr.mxu0 0.0
  %696 = vmatpush1.msra.mxu0 0.0
  %697 = vmatprep.subr.mxu0 0.0
  %698 = vmatpush1.msra.mxu0 0.0
  %699 = vmatprep.subr.mxu0 0.0
  %700 = vmatpush1.msra.mxu0 0.0
  %701 = vmatprep.subr.mxu0 0.0
  %702 = vmatpush1.msra.mxu0 0.0
  %703 = vmatprep.subr.mxu0 0.0
  %704 = vmatpush1.msra.mxu0 0.0
  %705 = vmatprep.subr.mxu0 0.0
  %706 = vmatpush1.msra.mxu0 0.0
  %707 = vmatprep.subr.mxu0 0.0
  %708 = vmatpush1.msra.mxu0 0.0
  %709 = vmatprep.subr.mxu0 0.0
  %710 = vmatpush1.msra.mxu0 0.0
  %711 = vmatprep.subr.mxu0 0.0
  %712 = vmatpush1.msra.mxu0 0.0
  %713 = vmatprep.subr.mxu0 0.0
  %714 = vmatpush1.msra.mxu0 0.0
  %715 = vmatprep.subr.mxu0 0.0
  %716 = vmatpush1.msra.mxu0 0.0
  %717 = vmatprep.subr.mxu0 0.0
  %718 = vmatpush1.msra.mxu0 0.0
  %719 = vmatprep.subr.mxu0 0.0
  %720 = vmatpush1.msra.mxu0 0.0
  %721 = vmatprep.subr.mxu0 0.0
  %722 = vmatpush1.msra.mxu0 0.0
  %723 = vmatprep.subr.mxu0 0.0
  %724 = vmatpush1.msra.mxu0 0.0
  %725 = vmatprep.subr.mxu0 0.0
  %726 = vmatpush1.msra.mxu0 0.0
  %727 = vmatprep.subr.mxu0 0.0
  %728 = vmatpush1.msra.mxu0 0.0
  %729 = vmatprep.subr.mxu0 0.0
  %730 = vmatpush1.msra.mxu0 0.0
  %731 = vmatprep.subr.mxu0 0.0
  %732 = vmatpush1.msra.mxu0 0.0
  %733 = vmatprep.subr.mxu0 0.0
  %734 = vmatpush1.msra.mxu0 0.0
  %735 = vmatprep.subr.mxu0 0.0
  %736 = vmatpush1.msra.mxu0 0.0
  %737 = vmatprep.subr.mxu0 0.0
  %738 = vmatpush1.msra.mxu0 0.0
  %739 = vmatprep.mubr.f32.mxu0 0.0
  %740 = vmatmul.mubr.f32.gmra.mrb[0].mxu0 %v138
  %v741 = vpop.f32.mrb[0].mxu0
  %v742 = vadd.f32 0.0, %v741
  %v743 = vpop.f32.mrb[0].mxu0
  %744 = vmatprep.mubr.f32.mxu0 0.0
  %745 = vmatmul.mubr.f32.gmra.mrb[0].mxu0 %v140
  %v746 = vpop.f32.mrb[0].mxu0
  %v747 = vadd.f32 0.0, %v746
  %v748 = vpop.f32.mrb[0].mxu0
  %749 = vmatprep.mubr.f32.mxu0 0.0
  %750 = vmatmul.mubr.f32.gmra.mrb[0].mxu0 %v142
  %v751 = vpop.f32.mrb[0].mxu0
  %v752 = vadd.f32 0.0, %v751
  %v753 = vpop.f32.mrb[0].mxu0
  %754 = vmatprep.mubr.f32.mxu0 0.0
  %755 = vmatmul.mubr.f32.gmra.mrb[0].mxu0 %v144
  %v756 = vpop.f32.mrb[0].mxu0
  %v757 = vadd.f32 0.0, %v756
  %v758 = vpop.f32.mrb[0].mxu0
  %759 = vmatprep.mubr.f32.mxu0 0.0
  %760 = vmatmul.mubr.f32.gmra.mrb[0].mxu0 %v146
  %v761 = vpop.f32.mrb[0].mxu0
  %v762 = vadd.f32 0.0, %v761
  %v763 = vpop.f32.mrb[0].mxu0
  %764 = vmatprep.mubr.f32.mxu0 0.0
  %765 = vmatmul.mubr.f32.gmra.mrb[0].mxu0 %v148
  %v766 = vpop.f32.mrb[0].mxu0
  %v767 = vadd.f32 0.0, %v766
  %v768 = vpop.f32.mrb[0].mxu0
  %769 = vmatprep.mubr.f32.mxu0 0.0
  %770 = vmatmul.mubr.f32.gmra.mrb[0].mxu0 %v150
  %v771 = vpop.f32.mrb[0].mxu0
  %v772 = vadd.f32 0.0, %v771
  %v773 = vpop.f32.mrb[0].mxu0
  %774 = vmatprep.mubr.f32.mxu0 0.0
  %775 = vmatmul.mubr.f32.gmra.mrb[0].mxu0 %v671
  %v776 = vpop.f32.mrb[0].mxu0
  %v777 = vadd.f32 0.0, %v776
  %v778 = vpop.f32.mrb[0].mxu0
  %779 = vmatprep.mubr.f32.mxu0 0.0
  %780 = vmatmul.mubr.f32.gmra.mrb[0].mxu0 %v154
  %v781 = vpop.f32.mrb[0].mxu0
  %v782 = vadd.f32 0.0, %v781
  %v783 = vpop.f32.mrb[0].mxu0
  %784 = vmatprep.mubr.f32.mxu0 0.0
  %785 = vmatmul.mubr.f32.gmra.mrb[0].mxu0 %v156
  %v786 = vpop.f32.mrb[0].mxu0
  %v787 = vadd.f32 0.0, %v786
  %v788 = vpop.f32.mrb[0].mxu0
  %789 = vmatprep.mubr.f32.mxu0 0.0
  %790 = vmatmul.mubr.f32.gmra.mrb[0].mxu0 %v158
  %v791 = vpop.f32.mrb[0].mxu0
  %v792 = vadd.f32 0.0, %v791
  %v793 = vpop.f32.mrb[0].mxu0
  %794 = vmatprep.mubr.f32.mxu0 0.0
  %795 = vmatmul.mubr.f32.gmra.mrb[0].mxu0 %v160
  %v796 = vpop.f32.mrb[0].mxu0
  %v797 = vadd.f32 0.0, %v796
  %v798 = vpop.f32.mrb[0].mxu0
  %799 = vmatprep.mubr.f32.mxu0 0.0
  %800 = vmatmul.mubr.f32.gmra.mrb[0].mxu0 %v162
  %v801 = vpop.f32.mrb[0].mxu0
  %v802 = vadd.f32 0.0, %v801
  %v803 = vpop.f32.mrb[0].mxu0
  %804 = vmatprep.mubr.f32.mxu0 0.0
  %805 = vmatmul.mubr.f32.gmra.mrb[0].mxu0 %v164
  %v806 = vpop.f32.mrb[0].mxu0
  %v807 = vadd.f32 0.0, %v806
  %v808 = vpop.f32.mrb[0].mxu0
  %809 = vmatprep.mubr.f32.mxu0 0.0
  %810 = vmatmul.mubr.f32.gmra.mrb[0].mxu0 %v166
  %v811 = vpop.f32.mrb[0].mxu0
  %v812 = vadd.f32 0.0, %v811
  %v813 = vpop.f32.mrb[0].mxu0
  %814 = vmatprep.mubr.f32.mxu0 0.0
  %815 = vmatmul.mubr.f32.gmra.mrb[0].mxu0 %v673
  %v816 = vpop.f32.mrb[0].mxu0
  %v817 = vadd.f32 0.0, %v816
  %v818 = vpop.f32.mrb[0].mxu0
  %819 = vdwg.mxu0
  %v820 = vadd.f32 %v644, %v742
  %v821 = vadd.f32 %v645, %v747
  %v822 = vadd.f32 %v646, %v752
  %v823 = vadd.f32 %v647, %v757
  %v824 = vadd.f32 %v648, %v762
  %v825 = vadd.f32 %v649, %v767
  %v826 = vadd.f32 %v650, %v772
  %v827 = vadd.f32 %v651, %v777
  %v828 = vadd.f32 %v652, %v782
  %v829 = vadd.f32 %v653, %v787
  %v830 = vadd.f32 %v654, %v792
  %v831 = vadd.f32 %v655, %v797
  %v832 = vadd.f32 %v656, %v802
  %v833 = vadd.f32 %v657, %v807
  %v834 = vadd.f32 %v658, %v812
  %v835 = vadd.f32 %v659, %v817
  %836 = vxpose.xlu0.b32.start [1/16] %v820, 128
  %837 = vxpose.xlu0.b32.cont [2/16] %v821, 128
  %838 = vxpose.xlu0.b32.cont [3/16] %v822, 128
  %839 = vxpose.xlu0.b32.cont [4/16] %v823, 128
  %840 = vxpose.xlu0.b32.cont [5/16] %v824, 128
  %841 = vxpose.xlu0.b32.cont [6/16] %v825, 128
  %842 = vxpose.xlu0.b32.cont [7/16] %v826, 128
  %843 = vxpose.xlu0.b32.cont [8/16] %v827, 128
  %844 = vxpose.xlu0.b32.cont [9/16] 0.0, 128
  %845 = vxpose.xlu0.b32.cont [10/16] 0.0, 128
  %846 = vxpose.xlu0.b32.cont [11/16] 0.0, 128
  %847 = vxpose.xlu0.b32.cont [12/16] 0.0, 128
  %848 = vxpose.xlu0.b32.cont [13/16] 0.0, 128
  %849 = vxpose.xlu0.b32.cont [14/16] 0.0, 128
  %850 = vxpose.xlu0.b32.cont [15/16] 0.0, 128
  %851 = vxpose.xlu0.b32.end [16/16] 0.0, 128
  %v852 = vpop.trf.xlu0
  %v853 = vpop.trf.xlu0
  %v854 = vpop.trf.xlu0
  %v855 = vpop.trf.xlu0
  %v856 = vpop.trf.xlu0
  %v857 = vpop.trf.xlu0
  %v858 = vpop.trf.xlu0
  %v859 = vpop.trf.xlu0
  %v860 = vpop.trf.xlu0
  %v861 = vpop.trf.xlu0
  %v862 = vpop.trf.xlu0
  %v863 = vpop.trf.xlu0
  %v864 = vpop.trf.xlu0
  %v865 = vpop.trf.xlu0
  %v866 = vpop.trf.xlu0
  %v867 = vpop.trf.xlu0
  %vm868 = vcmask 523264
  %869 = vst.msk [vmem:[%s2] sm:$0xff] %vm868, %v852
  %870 = vxpose.xlu0.b32.start [1/16] %v828, 128
  %871 = vxpose.xlu0.b32.cont [2/16] %v829, 128
  %872 = vxpose.xlu0.b32.cont [3/16] %v830, 128
  %873 = vxpose.xlu0.b32.cont [4/16] %v831, 128
  %874 = vxpose.xlu0.b32.cont [5/16] %v832, 128
  %875 = vxpose.xlu0.b32.cont [6/16] %v833, 128
  %876 = vxpose.xlu0.b32.cont [7/16] %v834, 128
  %877 = vxpose.xlu0.b32.cont [8/16] %v835, 128
  %878 = vxpose.xlu0.b32.cont [9/16] 0.0, 128
  %879 = vxpose.xlu0.b32.cont [10/16] 0.0, 128
  %880 = vxpose.xlu0.b32.cont [11/16] 0.0, 128
  %881 = vxpose.xlu0.b32.cont [12/16] 0.0, 128
  %882 = vxpose.xlu0.b32.cont [13/16] 0.0, 128
  %883 = vxpose.xlu0.b32.cont [14/16] 0.0, 128
  %884 = vxpose.xlu0.b32.cont [15/16] 0.0, 128
  %885 = vxpose.xlu0.b32.end [16/16] 0.0, 128
  %v886 = vpop.trf.xlu0
  %v887 = vpop.trf.xlu0
  %v888 = vpop.trf.xlu0
  %v889 = vpop.trf.xlu0
  %v890 = vpop.trf.xlu0
  %v891 = vpop.trf.xlu0
  %v892 = vpop.trf.xlu0
  %v893 = vpop.trf.xlu0
  %v894 = vpop.trf.xlu0
  %v895 = vpop.trf.xlu0
  %v896 = vpop.trf.xlu0
  %v897 = vpop.trf.xlu0
  %v898 = vpop.trf.xlu0
  %v899 = vpop.trf.xlu0
  %v900 = vpop.trf.xlu0
  %v901 = vpop.trf.xlu0
  %s902 = scalar_lea.vmem %s2, 8
  %903 = vst.msk [vmem:[%s902] sm:$0xff] %vm868, %v886
  %vm904 = vcmask 64512
  %v905 = vsel %vm904, %v820, 0.0
  %v906 = vsel %vm904, %v821, 0.0
  %v907 = vadd.f32 %v905, %v906
  %v908 = vsel %vm904, %v822, 0.0
  %v909 = vadd.f32 %v907, %v908
  %v910 = vsel %vm904, %v823, 0.0
  %v911 = vadd.f32 %v909, %v910
  %v912 = vsel %vm904, %v824, 0.0
  %v913 = vadd.f32 %v911, %v912
  %v914 = vsel %vm904, %v825, 0.0
  %v915 = vadd.f32 %v913, %v914
  %v916 = vsel %vm904, %v826, 0.0
  %v917 = vadd.f32 %v915, %v916
  %v918 = vsel %vm904, %v827, 0.0
  %v919 = vadd.f32 %v917, %v918
  %v920 = vsel %vm904, %v828, 0.0
  %v921 = vadd.f32 %v919, %v920
  %v922 = vsel %vm904, %v829, 0.0
  %v923 = vadd.f32 %v921, %v922
  %v924 = vsel %vm904, %v830, 0.0
  %v925 = vadd.f32 %v923, %v924
  %v926 = vsel %vm904, %v831, 0.0
  %v927 = vadd.f32 %v925, %v926
  %v928 = vsel %vm904, %v832, 0.0
  %v929 = vadd.f32 %v927, %v928
  %v930 = vsel %vm904, %v833, 0.0
  %v931 = vadd.f32 %v929, %v930
  %v932 = vsel %vm904, %v834, 0.0
  %v933 = vadd.f32 %v931, %v932
  %v934 = vsel %vm904, %v835, 0.0
  %v935 = vadd.f32 %v933, %v934
  %v936 = vrot.slane %v935, 4
  %v937 = vadd.f32 %v935, %v936
  %v938 = vrot.slane %v937, 2
  %v939 = vadd.f32 %v937, %v938
  %v940 = vrot.slane %v939, 1
  %v941 = vadd.f32 %v939, %v940
  %v942 = vmul.f32 %v820, %v820
  %v943 = vmul.f32 %v821, %v821
  %v944 = vmul.f32 %v822, %v822
  %v945 = vmul.f32 %v823, %v823
  %v946 = vmul.f32 %v824, %v824
  %v947 = vmul.f32 %v825, %v825
  %v948 = vmul.f32 %v826, %v826
  %v949 = vmul.f32 %v827, %v827
  %v950 = vmul.f32 %v828, %v828
  %v951 = vmul.f32 %v829, %v829
  %v952 = vmul.f32 %v830, %v830
  %v953 = vmul.f32 %v831, %v831
  %v954 = vmul.f32 %v832, %v832
  %v955 = vmul.f32 %v833, %v833
  %v956 = vmul.f32 %v834, %v834
  %v957 = vmul.f32 %v835, %v835
  %v958 = vsel %vm904, %v942, 0.0
  %v959 = vsel %vm904, %v943, 0.0
  %v960 = vadd.f32 %v958, %v959
  %v961 = vsel %vm904, %v944, 0.0
  %v962 = vadd.f32 %v960, %v961
  %v963 = vsel %vm904, %v945, 0.0
  %v964 = vadd.f32 %v962, %v963
  %v965 = vsel %vm904, %v946, 0.0
  %v966 = vadd.f32 %v964, %v965
  %v967 = vsel %vm904, %v947, 0.0
  %v968 = vadd.f32 %v966, %v967
  %v969 = vsel %vm904, %v948, 0.0
  %v970 = vadd.f32 %v968, %v969
  %v971 = vsel %vm904, %v949, 0.0
  %v972 = vadd.f32 %v970, %v971
  %v973 = vsel %vm904, %v950, 0.0
  %v974 = vadd.f32 %v972, %v973
  %v975 = vsel %vm904, %v951, 0.0
  %v976 = vadd.f32 %v974, %v975
  %v977 = vsel %vm904, %v952, 0.0
  %v978 = vadd.f32 %v976, %v977
  %v979 = vsel %vm904, %v953, 0.0
  %v980 = vadd.f32 %v978, %v979
  %v981 = vsel %vm904, %v954, 0.0
  %v982 = vadd.f32 %v980, %v981
  %v983 = vsel %vm904, %v955, 0.0
  %v984 = vadd.f32 %v982, %v983
  %v985 = vsel %vm904, %v956, 0.0
  %v986 = vadd.f32 %v984, %v985
  %v987 = vsel %vm904, %v957, 0.0
  %v988 = vadd.f32 %v986, %v987
  %v989 = vrot.slane %v988, 4
  %v990 = vadd.f32 %v988, %v989
  %v991 = vrot.slane %v990, 2
  %v992 = vadd.f32 %v990, %v991
  %v993 = vrot.slane %v992, 1
  %v994 = vadd.f32 %v992, %v993
  %vm995 = vcmask 1040384
  %v996 = vsel %vm995, %v941, %v994
  %vm997 = vcmask 58368
  %998 = vst.msk [vmem:[%s3] sm:$0x3] %vm997, %v996
  // Predicated region
  $region10: #{strided_conv_block.2} parent=0 // pred_check
    _
  $region11: #{strided_conv_block.2} parent=0 // pred_check_branch
    %1000 = sbr.rel (0) target = $region13
  $region12: #{strided_conv_block.2} parent=0 // pred_region
    _
  $region13: #{strided_conv_block.2} parent=0 // pred_fallthru
    _
  // Predicated region
  $region14: #{strided_conv_block.2} parent=0 // pred_check
    _
  $region15: #{strided_conv_block.2} parent=0 // pred_check_branch
    %1002 = sbr.rel (0) target = $region17
  $region16: #{strided_conv_block.2} parent=0 // pred_region
    _
  $region17: #{strided_conv_block.2} parent=0 // pred_fallthru
    _
  // Predicated region
  $region18: #{strided_conv_block.2} parent=0 // pred_check
    _
  $region19: #{strided_conv_block.2} parent=0 // pred_check_branch
    %1004 = sbr.rel (0) target = $region21
  $region20: #{strided_conv_block.2} parent=0 // pred_region
    _
  $region21: #{strided_conv_block.2} parent=0 // pred_fallthru
    _
  // Predicated region
  $region22: #{strided_conv_block.2} parent=0 // pred_check
    _
  $region23: #{strided_conv_block.2} parent=0 // pred_check_branch
    %1006 = sbr.rel (0) target = $region25
  $region24: #{strided_conv_block.2} parent=0 // pred_region
    _
  $region25: #{strided_conv_block.2} parent=0 // pred_fallthru
    _

</llo_original>
